<compile_context>
chip_gen: v7x
topology: tpu7x:2x2x1
jax: 0.10.0
libtpu: 0.0.40
codegen_flags: <defaults>
</compile_context>

<pallas_src>
import math
from functools import partial

import jax
import jax.numpy as jnp
from jax.experimental import pallas as pl
from jax.experimental.pallas import tpu as pltpu


def _round_up(x, m):
    return (x + m - 1) // m * m


def _cdiv(a, b):
    return -(-a // b)


def _mlp_kernel(x_ref, w_ref, b_ref, o_ref, *, kp, dp):
    """x_ref: (TB, kp) bf16; w_ref: (kp+dp, dp) bf16; b_ref: (8, dp) f32.

    Packed weight rows (all lane-padded to dp columns, tile-aligned slices):
      rows [0, kp)       -> w1  (kp, dp)
      rows [kp, kp+dp)   -> w2  (dp, dp)
    Bias rows (f32): row 0 -> b1, row 1 -> b2.
    """
    x = x_ref[...]                                  # already bf16 (wrapper pad)
    w1 = w_ref[:kp, :]                              # (kp, dp) bf16
    w2 = w_ref[kp:kp + dp, :]                       # (dp, dp) bf16
    b1 = b_ref[0:1, :]                              # (1, dp) f32
    b2 = b_ref[1:2, :]                              # (1, dp) f32

    h = jnp.dot(x, w1, preferred_element_type=jnp.float32) + b1
    h = h * jax.nn.sigmoid(h)                       # SiLU in f32 (v5e-safe)
    out = jnp.dot(h.astype(jnp.bfloat16), w2,
                  preferred_element_type=jnp.float32) + b2
    o_ref[...] = out.astype(o_ref.dtype)


def pack_params(w1, b1, w2, b2, w_dtype=jnp.bfloat16):
    """Pack (w1, w2) into one lane-dense bf16 slab; biases stay f32."""
    K, D = w1.shape
    assert w2.shape == (D, D)
    Kp = _round_up(K, 128)            # lane-dense x / tile-aligned slice boundary
    Dp = _round_up(D, 128)            # lane-dense hidden & output features
    w_packed = jnp.zeros((Kp + Dp, Dp), w_dtype)
    w_packed = w_packed.at[:K, :D].set(w1.astype(w_dtype))
    w_packed = w_packed.at[Kp:Kp + D, :D].set(w2.astype(w_dtype))
    bias = jnp.zeros((8, Dp), jnp.float32)          # 8-row f32 tile: b1, b2, pad
    bias = bias.at[0, :D].set(b1.reshape(-1).astype(jnp.float32))
    bias = bias.at[1, :D].set(b2.reshape(-1).astype(jnp.float32))
    return w_packed, bias, (K, D, Kp, Dp)


def vector_conditioning(cond_vector, w_packed, bias, dims, *, tb_max=512):
    """cond_vector: (B, num_proto) -> (B, cond_emb_dims_exp)."""
    K, D, Kp, Dp = dims
    B = cond_vector.shape[0]
    assert cond_vector.shape[1] == K

    # Balanced batch tiling: nearly-full last tile (no 40% zero-fill), even
    # step count when tiled so v7x megacore shards across both TensorCores.
    n_tiles = max(1, _cdiv(B, tb_max))
    if n_tiles > 1 and n_tiles % 2:
        n_tiles += 1
    tb = _round_up(_cdiv(B, n_tiles), 8)
    Bp = _round_up(B, tb)
    grid_steps = Bp // tb

    # Lane-dense, sublane-aligned x emitted directly in bf16 (halves x DMA
    # bytes; MXU operand is bf16 either way). Zero pad-columns of x meet zero
    # pad-rows of w1, so results stay exact.
    x_pad = jnp.zeros((Bp, Kp), jnp.bfloat16).at[:B, :K].set(
        cond_vector.astype(jnp.bfloat16))
    # TODO(synk): move the K-pad in-kernel (pass (B, K) with a full-dim block)
    # to remove the wrapper-side pad round trip once K stops being toy-sized.

    out_shape = jax.ShapeDtypeStruct((Bp, Dp), jnp.float32)
    kernel = partial(_mlp_kernel, kp=Kp, dp=Dp)

    # VMEM budget: weights + bias single-buffered (resident), x / out tiles
    # double-buffered by the pipeline; 2x headroom for relayouts & compiler
    # scratch, capped under v7x's 64 MiB physical per-TC VMEM.  Also lifts
    # v5e's 16 MiB default scoped limit.
    w_bytes = int(w_packed.size) * w_packed.dtype.itemsize
    b_bytes = int(bias.size) * bias.dtype.itemsize
    x_tile_bytes = tb * Kp * 2
    o_tile_bytes = tb * Dp * 4
    budget = w_bytes + b_bytes + 2 * (x_tile_bytes + o_tile_bytes)
    vmem_limit = int(min(max(2 * budget, 32 * 1024 * 1024), 60 * 1024 * 1024))
    # TODO(synk): add a hidden-dim (reduction) / output-N grid axis (tiles in
    # multiples of 256 for v6e/v7x MXUs) once cond_emb_dims_exp grows past
    # what resident weights allow under this budget.

    cost = pl.CostEstimate(
        flops=2 * Bp * (Kp * Dp + Dp * Dp),
        transcendentals=Bp * Dp,
        bytes_accessed=Bp * Kp * 2 + w_bytes + b_bytes + Bp * Dp * 4)

    vmem = pltpu.MemorySpace.VMEM
    if grid_steps == 1:
        # Trivial-size path: no grid pipeline — 3 input DMAs + 1 output DMA,
        # everything whole-array resident in VMEM.
        # TODO(synk): on v7x, split even this path across both TensorCores
        # once D reaches production (compute-bound) size.
        out_pad = pl.pallas_call(
            kernel,
            out_shape=out_shape,
            in_specs=[pl.BlockSpec(memory_space=vmem),
                      pl.BlockSpec(memory_space=vmem),
                      pl.BlockSpec(memory_space=vmem)],
            out_specs=pl.BlockSpec(memory_space=vmem),
            compiler_params=pltpu.CompilerParams(vmem_limit_bytes=vmem_limit),
            cost_estimate=cost,
        )(x_pad, w_packed, bias)
    else:
        # Batch-tiled path: x / out pipelined per tile; weights + biases are
        # whole-array resident (single-buffered, one DMA total, no 2x copy);
        # "parallel" lets v7x shard grid steps across both TensorCores.
        out_pad = pl.pallas_call(
            kernel,
            out_shape=out_shape,
            grid=(grid_steps,),
            in_specs=[pl.BlockSpec((tb, Kp), lambda i: (i, 0)),
                      pl.BlockSpec(memory_space=vmem),
                      pl.BlockSpec(memory_space=vmem)],
            out_specs=pl.BlockSpec((tb, Dp), lambda i: (i, 0)),
            compiler_params=pltpu.CompilerParams(
                dimension_semantics=("parallel",),
                vmem_limit_bytes=vmem_limit),
            cost_estimate=cost,
        )(x_pad, w_packed, bias)

    return out_pad[:B, :D]


def init_params(key, num_proto, cond_emb_dims_exp, dtype=jnp.float32):
    """Deterministic PyTorch-style Linear init: U(-1/sqrt(fan_in), 1/sqrt(fan_in))."""
    k1, k2, k3, k4 = jax.random.split(key, 4)
    bound1 = 1.0 / math.sqrt(num_proto)
    bound2 = 1.0 / math.sqrt(cond_emb_dims_exp)
    # stored as (in, out) — transpose of PyTorch's (out, in)
    w1 = jax.random.uniform(k1, (num_proto, cond_emb_dims_exp), dtype,
                            minval=-bound1, maxval=bound1)
    b1 = jax.random.uniform(k2, (cond_emb_dims_exp,), dtype,
                            minval=-bound1, maxval=bound1)
    w2 = jax.random.uniform(k3, (cond_emb_dims_exp, cond_emb_dims_exp), dtype,
                            minval=-bound2, maxval=bound2)
    b2 = jax.random.uniform(k4, (cond_emb_dims_exp,), dtype,
                            minval=-bound2, maxval=bound2)
    return w1, b1, w2, b2


def reference(cond_vector, w1, b1, w2, b2):
    h = cond_vector @ w1 + b1
    h = h * jax.nn.sigmoid(h)
    return h @ w2 + b2


if __name__ == "__main__":
    num_proto = 8
    cond_emb_dims_exp = 32
    batch = 8

    key = jax.random.PRNGKey(0)
    kx, kparam = jax.random.split(key)
    cond_vector = jax.random.normal(kx, (batch, num_proto), jnp.float32)
    w1, b1, w2, b2 = init_params(kparam, num_proto, cond_emb_dims_exp)

    w_packed, bias, dims = pack_params(w1, b1, w2, b2)

    out = vector_conditioning(cond_vector, w_packed, bias, dims)
    out = jax.block_until_ready(out)

    # Reference uses the same bf16-rounded weights (biases stay f32, matching
    # the kernel) so the comparison isolates kernel arithmetic from the
    # deliberate bf16 weight quantization.
    w1q = w1.astype(jnp.bfloat16).astype(jnp.float32)
    w2q = w2.astype(jnp.bfloat16).astype(jnp.float32)
    ref = reference(cond_vector, w1q, b1, w2q, b2)

    assert out.shape == (batch, cond_emb_dims_exp)
    assert jnp.allclose(out, ref, atol=2e-2, rtol=2e-2), \
        float(jnp.max(jnp.abs(out - ref)))

    # Also exercise the batch-tiled, megacore-parallel grid path
    # (B=1200 -> 4 balanced tiles of 304 rows).
    big_batch = 1200
    xb = jax.random.normal(jax.random.PRNGKey(1), (big_batch, num_proto),
                           jnp.float32)
    out_big = jax.block_until_ready(
        vector_conditioning(xb, w_packed, bias, dims))
    ref_big = reference(xb, w1q, b1, w2q, b2)
    assert out_big.shape == (big_batch, cond_emb_dims_exp)
    assert jnp.allclose(out_big, ref_big, atol=2e-2, rtol=2e-2), \
        float(jnp.max(jnp.abs(out_big - ref_big)))

    print("KERNEL_OK")
</pallas_src>

<mosaic_0001>
module attributes {stable_mosaic.version = 11 : i64} {
  func.func @_mlp_kernel(%arg0: memref<8x128xbf16, #tpu.memory_space<vmem>>, %arg1: memref<256x128xbf16, #tpu.memory_space<vmem>>, %arg2: memref<8x128xf32, #tpu.memory_space<vmem>>, %arg3: memref<8x128xf32, #tpu.memory_space<vmem>>) attributes {dimension_semantics = [], scalar_prefetch = 0 : i64, scratch_operands = 0 : i64, tpu.core_type = #tpu.core_type<tc>} {
    %c0 = arith.constant 0 : index
    %c0_0 = arith.constant 0 : index
    %0 = vector.load %arg0[%c0, %c0_0] : memref<8x128xbf16, #tpu.memory_space<vmem>>, vector<8x128xbf16>
    %c0_1 = arith.constant 0 : index
    %c0_2 = arith.constant 0 : index
    %1 = vector.load %arg1[%c0_1, %c0_2] : memref<256x128xbf16, #tpu.memory_space<vmem>>, vector<128x128xbf16>
    %c128 = arith.constant 128 : index
    %c0_3 = arith.constant 0 : index
    %2 = vector.load %arg1[%c128, %c0_3] : memref<256x128xbf16, #tpu.memory_space<vmem>>, vector<128x128xbf16>
    %c0_4 = arith.constant 0 : index
    %c0_5 = arith.constant 0 : index
    %3 = vector.load %arg2[%c0_4, %c0_5] : memref<8x128xf32, #tpu.memory_space<vmem>>, vector<1x128xf32>
    %c1 = arith.constant 1 : index
    %c0_6 = arith.constant 0 : index
    %4 = vector.load %arg2[%c1, %c0_6] : memref<8x128xf32, #tpu.memory_space<vmem>>, vector<1x128xf32>
    %cst = arith.constant dense<0.000000e+00> : vector<8x128xf32>
    %5 = tpu.matmul %0, %1, %cst {dimension_numbers = #tpu.dot_dimension_numbers<[1], [0], [0], [1], [0, 0, 1, 1], [], []>} : vector<8x128xbf16>, vector<128x128xbf16>, vector<8x128xf32> -> vector<8x128xf32>
    %6 = vector.broadcast %3 : vector<1x128xf32> to vector<8x128xf32>
    %7 = arith.addf %5, %6 : vector<8x128xf32>
    %8 = arith.negf %7 : vector<8x128xf32>
    %9 = math.exp %8 : vector<8x128xf32>
    %cst_7 = arith.constant 1.000000e+00 : f32
    %10 = vector.broadcast %cst_7 : f32 to vector<8x128xf32>
    %11 = arith.addf %10, %9 : vector<8x128xf32>
    %12 = arith.divf %10, %11 : vector<8x128xf32>
    %13 = arith.mulf %7, %12 : vector<8x128xf32>
    %14 = arith.truncf %13 : vector<8x128xf32> to vector<8x128xbf16>
    %cst_8 = arith.constant dense<0.000000e+00> : vector<8x128xf32>
    %15 = tpu.matmul %14, %2, %cst_8 {dimension_numbers = #tpu.dot_dimension_numbers<[1], [0], [0], [1], [0, 0, 1, 1], [], []>} : vector<8x128xbf16>, vector<128x128xbf16>, vector<8x128xf32> -> vector<8x128xf32>
    %16 = vector.broadcast %4 : vector<1x128xf32> to vector<8x128xf32>
    %17 = arith.addf %15, %16 : vector<8x128xf32>
    %c0_9 = arith.constant 0 : index
    %c0_10 = arith.constant 0 : index
    %18 = vector.load %arg3[%c0_9, %c0_10] : memref<8x128xf32, #tpu.memory_space<vmem>>, vector<8x128xf32>
    tpu.vector_store %arg3[%c0_9, %c0_10], %17 {strides = array<i32>} : memref<8x128xf32, #tpu.memory_space<vmem>>, vector<8x128xf32>,
    return
  }
}

</mosaic_0001>

<llo_original>
// kernel: tpu_custom_call.1
$region0: #{tpu_custom_call.1}
  #allocation0 [shape = 'u32[]', space=smem, size = 0x4, offset = 0x4, fixed_abs, tag = 'smem constant byte address 0x4 - core index']
  #allocation1 [shape = 'u32[144,128]{1,0:T(1,128)}', space=vmem, size = 0x12000, scoped, tag = 'internal scratch']
  %s0 = inlined_call_operand.hbm [shape: bf16[8,128], index: 0, kind: input, shape index: {}]
  %s1 = inlined_call_operand.hbm [shape: bf16[256,128], index: 1, kind: input, shape index: {}]
  %s2 = inlined_call_operand.hbm [shape: f32[8,128], index: 2, kind: input, shape index: {}]
  %s3 = inlined_call_operand.hbm [shape: f32[8,128], index: 3, kind: output, shape index: {}]
  %s4 = sld [smem:[#allocation0]]
  $region34: #{tpu_custom_call.1} parent=0
    _
  %s6 = ssub.s32 1, %s4
  %s7 = scalar_select 0, %s6, %s4
  $region1: #{tpu_custom_call.1} parent=0
    #allocation2 [shape = 'u8[2048]{0}', space=vmem, size = 0x800, scoped, tag = 'input window, operand 0, single buffered']
    #allocation3 [shape = 's32[1]{0}', space=sflag, size = 0x4, scoped, tag = 'scoped memory for tpu_custom_call.1']
    #allocation4 [shape = 's32[1]{0}', space=sflag, size = 0x4, scoped, tag = 'scoped memory for tpu_custom_call.1']
    #allocation5 [shape = 'u8[65536]{0}', space=vmem, size = 0x10000, scoped, tag = 'input window, operand 1, single buffered']
    #allocation6 [shape = 's32[1]{0}', space=sflag, size = 0x4, scoped, tag = 'scoped memory for tpu_custom_call.1']
    #allocation7 [shape = 'u8[4096]{0}', space=vmem, size = 0x1000, scoped, tag = 'input window, operand 2, single buffered']
    #allocation8 [shape = 'u8[4096]{0}', space=vmem, size = 0x1000, scoped, tag = 'output window, operand 0, single buffered']
    %8 = vsyncpa [#allocation3], 0
    %9 = vsyncpa [#allocation6], 0
    %10 = vsyncpa [#allocation4], 0
    // Predicated region
    $region2: #{tpu_custom_call.1} parent=1 // pred_check
      _
    $region3: #{tpu_custom_call.1} parent=1 // pred_check_branch
      %12 = sbr.rel (0) target = $region5
    $region4: #{tpu_custom_call.1} parent=1 // pred_region
      %s14 = ssub.s32 64, 64
      %15 = vsyncadd [#allocation3], %s14
      %s17 = sshll.u32 [#allocation2], 4
      %s18 = int_to_ptr.vmem [resolvable:$true] %s17
      %20 = dma.hbm_to_vmem [thread:$0]  %s0, 64, %s18, [#allocation3]
    $region5: #{tpu_custom_call.1} parent=1 // pred_fallthru
      _
    // Predicated region
    $region6: #{tpu_custom_call.1} parent=1 // pred_check
      _
    $region7: #{tpu_custom_call.1} parent=1 // pred_check_branch
      %22 = sbr.rel (0) target = $region9
    $region8: #{tpu_custom_call.1} parent=1 // pred_region
      %s24 = ssub.s32 2048, 2048
      %25 = vsyncadd [#allocation6], %s24
      %s26 = sshll.u32 [#allocation5], 4
      %s27 = int_to_ptr.vmem [resolvable:$true] %s26
      %32 = dma.hbm_to_vmem [thread:$0]  %s1, 2048, %s27, [#allocation6], 64, 64, 4
    $region9: #{tpu_custom_call.1} parent=1 // pred_fallthru
      _
    // Predicated region
    $region10: #{tpu_custom_call.1} parent=1 // pred_check
      _
    $region11: #{tpu_custom_call.1} parent=1 // pred_check_branch
      %34 = sbr.rel (0) target = $region13
    $region12: #{tpu_custom_call.1} parent=1 // pred_region
      %s36 = ssub.s32 128, 128
      %37 = vsyncadd [#allocation6], %s36
      %s39 = sshll.u32 [#allocation7], 4
      %s40 = int_to_ptr.vmem [resolvable:$true] %s39
      %42 = dma.hbm_to_vmem [thread:$0]  %s2, 128, %s40, [#allocation6]
    $region13: #{tpu_custom_call.1} parent=1 // pred_fallthru
      _
    // Predicated region
    $region14: #{tpu_custom_call.1} parent=1 // pred_check
      _
    $region15: #{tpu_custom_call.1} parent=1 // pred_check_branch
      %44 = sbr.rel (0) target = $region17
    $region16: #{tpu_custom_call.1} parent=1 // pred_region
      %45 = dma.done [#allocation3], 64
    $region17: #{tpu_custom_call.1} parent=1 // pred_fallthru
      _
    // Predicated region
    $region18: #{tpu_custom_call.1} parent=1 // pred_check
      _
    $region19: #{tpu_custom_call.1} parent=1 // pred_check_branch
      %47 = sbr.rel (0) target = $region21
    $region20: #{tpu_custom_call.1} parent=1 // pred_region
      %48 = dma.done [#allocation6], 2048
    $region21: #{tpu_custom_call.1} parent=1 // pred_fallthru
      _
    // Predicated region
    $region22: #{tpu_custom_call.1} parent=1 // pred_check
      _
    $region23: #{tpu_custom_call.1} parent=1 // pred_check_branch
      %50 = sbr.rel (0) target = $region25
    $region24: #{tpu_custom_call.1} parent=1 // pred_region
      %51 = dma.done [#allocation6], 128
    $region25: #{tpu_custom_call.1} parent=1 // pred_fallthru
      _
    %v53 = vld [vmem:[#allocation2] sm:$0xf]
    %v54 = vld [vmem:[#allocation5] sm:$0xf]
    %v55 = vld [vmem:[#allocation5 + $0x4] sm:$0xf]
    %v56 = vld [vmem:[#allocation5 + $0x8] sm:$0xf]
    %v57 = vld [vmem:[#allocation5 + $0xc] sm:$0xf]
    %v58 = vld [vmem:[#allocation5 + $0x10] sm:$0xf]
    %v59 = vld [vmem:[#allocation5 + $0x14] sm:$0xf]
    %v60 = vld [vmem:[#allocation5 + $0x18] sm:$0xf]
    %v61 = vld [vmem:[#allocation5 + $0x1c] sm:$0xf]
    %v62 = vld [vmem:[#allocation5 + $0x20] sm:$0xf]
    %v63 = vld [vmem:[#allocation5 + $0x24] sm:$0xf]
    %v64 = vld [vmem:[#allocation5 + $0x28] sm:$0xf]
    %v65 = vld [vmem:[#allocation5 + $0x2c] sm:$0xf]
    %v66 = vld [vmem:[#allocation5 + $0x30] sm:$0xf]
    %v67 = vld [vmem:[#allocation5 + $0x34] sm:$0xf]
    %v68 = vld [vmem:[#allocation5 + $0x38] sm:$0xf]
    %v69 = vld [vmem:[#allocation5 + $0x3c] sm:$0xf]
    %v70 = vld [vmem:[#allocation5 + $0x40] sm:$0xf]
    %v71 = vld [vmem:[#allocation5 + $0x44] sm:$0xf]
    %v72 = vld [vmem:[#allocation5 + $0x48] sm:$0xf]
    %v73 = vld [vmem:[#allocation5 + $0x4c] sm:$0xf]
    %v74 = vld [vmem:[#allocation5 + $0x50] sm:$0xf]
    %v75 = vld [vmem:[#allocation5 + $0x54] sm:$0xf]
    %v76 = vld [vmem:[#allocation5 + $0x58] sm:$0xf]
    %v77 = vld [vmem:[#allocation5 + $0x5c] sm:$0xf]
    %v78 = vld [vmem:[#allocation5 + $0x60] sm:$0xf]
    %v79 = vld [vmem:[#allocation5 + $0x64] sm:$0xf]
    %v80 = vld [vmem:[#allocation5 + $0x68] sm:$0xf]
    %v81 = vld [vmem:[#allocation5 + $0x6c] sm:$0xf]
    %v82 = vld [vmem:[#allocation5 + $0x70] sm:$0xf]
    %v83 = vld [vmem:[#allocation5 + $0x74] sm:$0xf]
    %v84 = vld [vmem:[#allocation5 + $0x78] sm:$0xf]
    %v85 = vld [vmem:[#allocation5 + $0x7c] sm:$0xf]
    %v86 = vld [vmem:[#allocation7] sm:$0x1]
    %v87 = vld [vmem:[#allocation7 + $0x1] sm:$0x1]
    %v88 = vlaneseq
    %v89 = vshrl.u32 %v88, 7
    %v90 = vsub.s32 0, %v89
    %v91 = vrot.slane %v86, %v90
    %v108 = vunpack.c.l.b16 %v54
    %v109 = vunpack.c.l.b16 %v55
    %v110 = vunpack.c.l.b16 %v56
    %v111 = vunpack.c.l.b16 %v57
    %v112 = vunpack.c.l.b16 %v58
    %v113 = vunpack.c.l.b16 %v59
    %v114 = vunpack.c.l.b16 %v60
    %v115 = vunpack.c.l.b16 %v61
    %v116 = vunpack.c.l.b16 %v62
    %v117 = vunpack.c.l.b16 %v63
    %v118 = vunpack.c.l.b16 %v64
    %v119 = vunpack.c.l.b16 %v65
    %v120 = vunpack.c.l.b16 %v66
    %v121 = vunpack.c.l.b16 %v67
    %v122 = vunpack.c.l.b16 %v68
    %v123 = vunpack.c.l.b16 %v69
    %v124 = vpack.c.b16 %v109, %v108
    %v125 = vpack.c.b16 %v111, %v110
    %v126 = vpack.c.b16 %v113, %v112
    %v127 = vpack.c.b16 %v115, %v114
    %v128 = vpack.c.b16 %v117, %v116
    %v129 = vpack.c.b16 %v119, %v118
    %v130 = vpack.c.b16 %v121, %v120
    %v131 = vpack.c.b16 %v123, %v122
    %140 = vmatprep.subr.bf16.mxu0 0
    %141 = vmatpush1.bf16.msra.mxu0 %v124
    %142 = vmatprep.subr.bf16.mxu0 0
    %143 = vmatpush1.bf16.msra.mxu0 %v125
    %144 = vmatprep.subr.bf16.mxu0 0
    %145 = vmatpush1.bf16.msra.mxu0 %v126
    %146 = vmatprep.subr.bf16.mxu0 0
    %147 = vmatpush1.bf16.msra.mxu0 %v127
    %148 = vmatprep.subr.bf16.mxu0 0
    %149 = vmatpush1.bf16.msra.mxu0 %v128
    %150 = vmatprep.subr.bf16.mxu0 0
    %151 = vmatpush1.bf16.msra.mxu0 %v129
    %152 = vmatprep.subr.bf16.mxu0 0
    %153 = vmatpush1.bf16.msra.mxu0 %v130
    %154 = vmatprep.subr.bf16.mxu0 0
    %155 = vmatpush1.bf16.msra.mxu0 %v131
    %156 = vmatprep.subr.bf16.mxu0 0
    %157 = vmatpush1.bf16.msra.mxu0 0
    %158 = vmatprep.subr.bf16.mxu0 0
    %159 = vmatpush1.bf16.msra.mxu0 0
    %160 = vmatprep.subr.bf16.mxu0 0
    %161 = vmatpush1.bf16.msra.mxu0 0
    %162 = vmatprep.subr.bf16.mxu0 0
    %163 = vmatpush1.bf16.msra.mxu0 0
    %164 = vmatprep.subr.bf16.mxu0 0
    %165 = vmatpush1.bf16.msra.mxu0 0
    %166 = vmatprep.subr.bf16.mxu0 0
    %167 = vmatpush1.bf16.msra.mxu0 0
    %168 = vmatprep.subr.bf16.mxu0 0
    %169 = vmatpush1.bf16.msra.mxu0 0
    %170 = vmatprep.subr.bf16.mxu0 0
    %171 = vmatpush1.bf16.msra.mxu0 0
    %172 = vmatprep.mubr.bf16.mxu0 0
    %173 = vmatmul.mubr.bf16.gmra.mrb[0].mxu0 %v53
    %v174 = vpop.f32.mrb[0].mxu0
    %v175 = vadd.f32 %v91, %v174
    %v176 = vpop.f32.mrb[0].mxu0
    %v177 = vpop.f32.mrb[0].mxu0
    %v178 = vpop.f32.mrb[0].mxu0
    %179 = vdwg.mxu0
    %v180 = vxor.u32 %v175, 2147483648
    %v181 = vmul.f32 %v180, 1.442695
    %v182 = vpow.pop %v181
    %v183 = vadd.f32 %v182, 1.0
    %v184 = vrcp.pop %v183
    %v185 = vmul.f32 1.0, %v184
    %v186 = vmul.f32 %v175, %v185
    %v187 = vpack.c.bf16 %v186, %v186
    %v188 = vlaneseq
    %v189 = vshrl.u32 %v188, 7
    %v190 = vsub.s32 0, %v189
    %v191 = vrot.slane %v87, %v190
    %v208 = vunpack.c.l.b16 %v70
    %v209 = vunpack.c.l.b16 %v71
    %v210 = vunpack.c.l.b16 %v72
    %v211 = vunpack.c.l.b16 %v73
    %v212 = vunpack.c.l.b16 %v74
    %v213 = vunpack.c.l.b16 %v75
    %v214 = vunpack.c.l.b16 %v76
    %v215 = vunpack.c.l.b16 %v77
    %v216 = vunpack.c.l.b16 %v78
    %v217 = vunpack.c.l.b16 %v79
    %v218 = vunpack.c.l.b16 %v80
    %v219 = vunpack.c.l.b16 %v81
    %v220 = vunpack.c.l.b16 %v82
    %v221 = vunpack.c.l.b16 %v83
    %v222 = vunpack.c.l.b16 %v84
    %v223 = vunpack.c.l.b16 %v85
    %v224 = vpack.c.b16 %v209, %v208
    %v225 = vpack.c.b16 %v211, %v210
    %v226 = vpack.c.b16 %v213, %v212
    %v227 = vpack.c.b16 %v215, %v214
    %v228 = vpack.c.b16 %v217, %v216
    %v229 = vpack.c.b16 %v219, %v218
    %v230 = vpack.c.b16 %v221, %v220
    %v231 = vpack.c.b16 %v223, %v222
    %240 = vmatprep.subr.bf16.mxu0 0
    %241 = vmatpush1.bf16.msra.mxu0 %v224
    %242 = vmatprep.subr.bf16.mxu0 0
    %243 = vmatpush1.bf16.msra.mxu0 %v225
    %244 = vmatprep.subr.bf16.mxu0 0
    %245 = vmatpush1.bf16.msra.mxu0 %v226
    %246 = vmatprep.subr.bf16.mxu0 0
    %247 = vmatpush1.bf16.msra.mxu0 %v227
    %248 = vmatprep.subr.bf16.mxu0 0
    %249 = vmatpush1.bf16.msra.mxu0 %v228
    %250 = vmatprep.subr.bf16.mxu0 0
    %251 = vmatpush1.bf16.msra.mxu0 %v229
    %252 = vmatprep.subr.bf16.mxu0 0
    %253 = vmatpush1.bf16.msra.mxu0 %v230
    %254 = vmatprep.subr.bf16.mxu0 0
    %255 = vmatpush1.bf16.msra.mxu0 %v231
    %256 = vmatprep.subr.bf16.mxu0 0
    %257 = vmatpush1.bf16.msra.mxu0 0
    %258 = vmatprep.subr.bf16.mxu0 0
    %259 = vmatpush1.bf16.msra.mxu0 0
    %260 = vmatprep.subr.bf16.mxu0 0
    %261 = vmatpush1.bf16.msra.mxu0 0
    %262 = vmatprep.subr.bf16.mxu0 0
    %263 = vmatpush1.bf16.msra.mxu0 0
    %264 = vmatprep.subr.bf16.mxu0 0
    %265 = vmatpush1.bf16.msra.mxu0 0
    %266 = vmatprep.subr.bf16.mxu0 0
    %267 = vmatpush1.bf16.msra.mxu0 0
    %268 = vmatprep.subr.bf16.mxu0 0
    %269 = vmatpush1.bf16.msra.mxu0 0
    %270 = vmatprep.subr.bf16.mxu0 0
    %271 = vmatpush1.bf16.msra.mxu0 0
    %272 = vmatprep.mubr.bf16.mxu0 0
    %273 = vmatmul.mubr.bf16.gmra.mrb[0].mxu0 %v187
    %v274 = vpop.f32.mrb[0].mxu0
    %v275 = vadd.f32 %v191, %v274
    %v276 = vpop.f32.mrb[0].mxu0
    %v277 = vpop.f32.mrb[0].mxu0
    %v278 = vpop.f32.mrb[0].mxu0
    %279 = vdwg.mxu0
    %280 = vst [vmem:[#allocation8] sm:$0xff] %v275
    // Predicated region
    $region26: #{tpu_custom_call.1} parent=1 // pred_check
      _
    $region27: #{tpu_custom_call.1} parent=1 // pred_check_branch
      %282 = sbr.rel (0) target = $region29
    $region28: #{tpu_custom_call.1} parent=1 // pred_region
      %s284 = ssub.s32 128, 128
      %285 = vsyncadd [#allocation4], %s284
      %s287 = sshll.u32 [#allocation8], 4
      %s288 = int_to_ptr.vmem [resolvable:$true] %s287
      %290 = dma.vmem_to_hbm [thread:$0]  %s288, 128, %s3, [#allocation4]
    $region29: #{tpu_custom_call.1} parent=1 // pred_fallthru
      _
    // Predicated region
    $region30: #{tpu_custom_call.1} parent=1 // pred_check
      _
    $region31: #{tpu_custom_call.1} parent=1 // pred_check_branch
      %292 = sbr.rel (0) target = $region33
    $region32: #{tpu_custom_call.1} parent=1 // pred_region
      %293 = dma.done [#allocation4], 128
    $region33: #{tpu_custom_call.1} parent=1 // pred_fallthru
      _
    %294 = vsyncpa [#allocation3], 1
    %295 = vsyncpa [#allocation6], 1
    %296 = vsyncpa [#allocation4], 1

</llo_original>
